<compile_context>
chip_gen: v7x
topology: tpu7x:2x2x1
jax: 0.10.0
libtpu: 0.0.40
codegen_flags: <defaults>
</compile_context>

<pallas_src>
import functools

import jax
import jax.numpy as jnp
from jax.experimental import pallas as pl
from jax.experimental.pallas import tpu as pltpu

DIGIT_CLASSES = 10
IMAGE_SIZE = 28 * 28          # 784

# config.{first,second}_hidden_layer — chosen lane-aligned (multiples of 128).
FIRST_HIDDEN = 128
SECOND_HIDDEN = 128

LANE = 128
SUBLANE = 8
PADDED_IMAGE = 7 * LANE       # 896  (784 zero-padded)
PADDED_CLASSES = LANE         # 128  (10 zero-padded)


def _batch_tile(b):
    """Batch tile: up to 256 rows (full-height MXU on v6e/v7x, 2 passes on v5e)."""
    if b >= 256:
        return 256
    return max(SUBLANE, ((b + SUBLANE - 1) // SUBLANE) * SUBLANE)


def _mlp_kernel(x_ref, w1_ref, b1_ref, w2_ref, b2_ref, w3_ref, b3_ref, tgt_ref,
                logits_ref, loss_ref, *, tile_b, batch):
    # ---- fc1 + relu (bf16 MXU feed, f32 accumulate / elementwise) ----
    h1 = jnp.dot(x_ref[...], w1_ref[...], preferred_element_type=jnp.float32)
    h1 = jnp.maximum(h1 + b1_ref[...], 0.0).astype(jnp.bfloat16)

    # ---- fc2 + relu ----
    h2 = jnp.dot(h1, w2_ref[...], preferred_element_type=jnp.float32)
    h2 = jnp.maximum(h2 + b2_ref[...], 0.0).astype(jnp.bfloat16)

    # ---- fc3 (logits, class dim padded to 128 lanes; pad cols are exactly 0) ----
    logits = jnp.dot(h2, w3_ref[...], preferred_element_type=jnp.float32)
    logits = logits + b3_ref[...]                       # (TB, 128) f32
    logits_ref[...] = logits                            # lane-dense store

    # ---- cross-entropy over the real 10 classes ----
    col = jax.lax.broadcasted_iota(jnp.int32, logits.shape, 1)
    masked = jnp.where(col < DIGIT_CLASSES, logits, -jnp.inf)
    m = jnp.max(masked, axis=-1, keepdims=True)
    lse = m + jnp.log(jnp.sum(jnp.exp(masked - m), axis=-1, keepdims=True))
    # one-hot target has zeros in padded columns -> use unmasked logits here
    picked = jnp.sum(tgt_ref[...] * logits, axis=-1, keepdims=True)
    nll = lse - picked                                  # (TB, 1)

    # mask rows that are batch padding, then reduce to a per-tile partial sum
    row = (jax.lax.broadcasted_iota(jnp.int32, nll.shape, 0)
           + pl.program_id(0) * tile_b)
    nll = jnp.where(row < batch, nll, 0.0)
    partial = jnp.sum(nll)                              # scalar f32
    loss_ref[...] = jnp.broadcast_to(partial, loss_ref.shape)  # (1, 8, 128)


@jax.jit
def mlp_forward(x, w1, b1, w2, b2, w3, b3, targets):
    """x: (B, 1, 28, 28) or (B, 784) f32; targets: (B,) int.
    Returns (logits (B, 10) f32, loss () f32)."""
    x = x.reshape(-1, IMAGE_SIZE)
    B = x.shape[0]
    TB = _batch_tile(B)
    num_tiles = pl.cdiv(B, TB)
    B_pad = num_tiles * TB

    # --- data prep: pad to lane-dense shapes, cast MXU feeds to bf16 ---
    xp = jnp.pad(x, ((0, B_pad - B), (0, PADDED_IMAGE - IMAGE_SIZE)))
    xp = xp.astype(jnp.bfloat16)
    w1p = jnp.pad(w1, ((0, PADDED_IMAGE - IMAGE_SIZE), (0, 0))).astype(jnp.bfloat16)
    w2p = w2.astype(jnp.bfloat16)
    w3p = jnp.pad(w3, ((0, 0), (0, PADDED_CLASSES - DIGIT_CLASSES))).astype(jnp.bfloat16)
    b1p = b1.astype(jnp.float32)
    b2p = b2.astype(jnp.float32)
    b3p = jnp.pad(b3, ((0, 0), (0, PADDED_CLASSES - DIGIT_CLASSES))).astype(jnp.float32)

    tgt = jax.nn.one_hot(targets, PADDED_CLASSES, dtype=jnp.float32)
    tgt = jnp.pad(tgt, ((0, B_pad - B), (0, 0)))

    tiled = lambda i: (i, 0)          # batch-tiled operands
    resident = lambda i: (0, 0)       # weights / biases stay VMEM-resident

    kernel = functools.partial(_mlp_kernel, tile_b=TB, batch=B)

    logits_pad, loss_parts = pl.pallas_call(
        kernel,
        grid=(num_tiles,),
        in_specs=[
            pl.BlockSpec((TB, PADDED_IMAGE), tiled),
            pl.BlockSpec((PADDED_IMAGE, FIRST_HIDDEN), resident),
            pl.BlockSpec((1, FIRST_HIDDEN), resident),
            pl.BlockSpec((FIRST_HIDDEN, SECOND_HIDDEN), resident),
            pl.BlockSpec((1, SECOND_HIDDEN), resident),
            pl.BlockSpec((SECOND_HIDDEN, PADDED_CLASSES), resident),
            pl.BlockSpec((1, PADDED_CLASSES), resident),
            pl.BlockSpec((TB, PADDED_CLASSES), tiled),
        ],
        out_specs=(
            pl.BlockSpec((TB, PADDED_CLASSES), tiled),
            pl.BlockSpec((1, SUBLANE, LANE), lambda i: (i, 0, 0)),
        ),
        out_shape=(
            jax.ShapeDtypeStruct((B_pad, PADDED_CLASSES), jnp.float32),
            jax.ShapeDtypeStruct((num_tiles, SUBLANE, LANE), jnp.float32),
        ),
        compiler_params=pltpu.CompilerParams(
            dimension_semantics=("parallel",),
            vmem_limit_bytes=32 * 1024 * 1024,
        ),
    )(xp, w1p, b1p, w2p, b2p, w3p, b3p, tgt)

    logits = logits_pad[:B, :DIGIT_CLASSES]
    loss = jnp.sum(loss_parts[:, 0, 0]) / jnp.float32(B)
    return logits, loss


def init_params(key):
    """Deterministic parameter init mimicking nn.Linear (uniform +/- 1/sqrt(fan_in)).
    Weights are stored (in_features, out_features), i.e. nn.Linear weight transposed."""
    ks = jax.random.split(key, 6)

    def linear(kw, kb, fan_in, fan_out):
        bound = 1.0 / jnp.sqrt(jnp.float32(fan_in))
        w = jax.random.uniform(kw, (fan_in, fan_out), jnp.float32, -bound, bound)
        b = jax.random.uniform(kb, (1, fan_out), jnp.float32, -bound, bound)
        return w, b

    w1, b1 = linear(ks[0], ks[1], IMAGE_SIZE, FIRST_HIDDEN)
    w2, b2 = linear(ks[2], ks[3], FIRST_HIDDEN, SECOND_HIDDEN)
    w3, b3 = linear(ks[4], ks[5], SECOND_HIDDEN, DIGIT_CLASSES)
    return w1, b1, w2, b2, w3, b3


if __name__ == "__main__":
    key = jax.random.PRNGKey(0)
    k_param, k_x, k_t = jax.random.split(key, 3)

    B = 8  # small demo batch
    x_img = jax.random.normal(k_x, (B, 1, 28, 28), jnp.float32)  # x.view(-1, 784) in wrapper
    targets = jax.random.randint(k_t, (B,), 0, DIGIT_CLASSES)

    params = init_params(k_param)
    w1, b1, w2, b2, w3, b3 = params

    logits, loss = mlp_forward(x_img, *params, targets)
    jax.block_until_ready((logits, loss))

    # ---- sanity check against plain JAX using the same bf16 matmul feeds ----
    x = x_img.reshape(-1, IMAGE_SIZE)
    xb = x.astype(jnp.bfloat16)
    h1 = jax.nn.relu(jnp.dot(xb, w1.astype(jnp.bfloat16),
                             preferred_element_type=jnp.float32) + b1)
    h2 = jax.nn.relu(jnp.dot(h1.astype(jnp.bfloat16), w2.astype(jnp.bfloat16),
                             preferred_element_type=jnp.float32) + b2)
    ref_logits = jnp.dot(h2.astype(jnp.bfloat16), w3.astype(jnp.bfloat16),
                         preferred_element_type=jnp.float32) + b3
    ref_loss = jnp.mean(jax.nn.logsumexp(ref_logits, axis=-1)
                        - ref_logits[jnp.arange(B), targets])

    assert logits.shape == (B, DIGIT_CLASSES)
    assert jnp.allclose(logits, ref_logits, atol=1e-3, rtol=1e-3)
    assert jnp.allclose(loss, ref_loss, atol=1e-3, rtol=1e-3)

    print("KERNEL_OK")
</pallas_src>

<mosaic_0001>
module attributes {stable_mosaic.version = 11 : i64} {
  func.func @_mlp_kernel(%arg0: i32, %arg1: memref<8x896xbf16, #tpu.memory_space<vmem>>, %arg2: memref<896x128xbf16, #tpu.memory_space<vmem>>, %arg3: memref<1x128xf32, #tpu.memory_space<vmem>>, %arg4: memref<128x128xbf16, #tpu.memory_space<vmem>>, %arg5: memref<1x128xf32, #tpu.memory_space<vmem>>, %arg6: memref<128x128xbf16, #tpu.memory_space<vmem>>, %arg7: memref<1x128xf32, #tpu.memory_space<vmem>>, %arg8: memref<8x128xf32, #tpu.memory_space<vmem>>, %arg9: memref<8x128xf32, #tpu.memory_space<vmem>>, %arg10: memref<1x8x128xf32, #tpu.memory_space<vmem>>) attributes {dimension_semantics = [#tpu.dimension_semantics<parallel>], iteration_bounds = array<i64: 1>, scalar_prefetch = 0 : i64, scratch_operands = 0 : i64, tpu.core_type = #tpu.core_type<tc>, window_params = [{transform_indices = @transform_0, window_bounds = array<i64: 8, 896>}, {pipeline_mode = #tpu.pipeline_mode<synchronous>, transform_indices = @transform_1, window_bounds = array<i64: 896, 128>}, {pipeline_mode = #tpu.pipeline_mode<synchronous>, transform_indices = @transform_2, window_bounds = array<i64: 1, 128>}, {pipeline_mode = #tpu.pipeline_mode<synchronous>, transform_indices = @transform_3, window_bounds = array<i64: 128, 128>}, {pipeline_mode = #tpu.pipeline_mode<synchronous>, transform_indices = @transform_4, window_bounds = array<i64: 1, 128>}, {pipeline_mode = #tpu.pipeline_mode<synchronous>, transform_indices = @transform_5, window_bounds = array<i64: 128, 128>}, {pipeline_mode = #tpu.pipeline_mode<synchronous>, transform_indices = @transform_6, window_bounds = array<i64: 1, 128>}, {transform_indices = @transform_7, window_bounds = array<i64: 8, 128>}, {transform_indices = @transform_8, window_bounds = array<i64: 8, 128>}, {transform_indices = @transform_9, window_bounds = array<i64: 1, 8, 128>}]} {
    %c0 = arith.constant 0 : index
    %c0_0 = arith.constant 0 : index
    %0 = vector.load %arg1[%c0, %c0_0] : memref<8x896xbf16, #tpu.memory_space<vmem>>, vector<8x896xbf16>
    %c0_1 = arith.constant 0 : index
    %c0_2 = arith.constant 0 : index
    %1 = vector.load %arg2[%c0_1, %c0_2] : memref<896x128xbf16, #tpu.memory_space<vmem>>, vector<896x128xbf16>
    %cst = arith.constant dense<0.000000e+00> : vector<8x128xf32>
    %2 = tpu.matmul %0, %1, %cst {dimension_numbers = #tpu.dot_dimension_numbers<[1], [0], [0], [1], [0, 0, 1, 1], [], []>} : vector<8x896xbf16>, vector<896x128xbf16>, vector<8x128xf32> -> vector<8x128xf32>
    %c0_3 = arith.constant 0 : index
    %c0_4 = arith.constant 0 : index
    %3 = vector.load %arg3[%c0_3, %c0_4] : memref<1x128xf32, #tpu.memory_space<vmem>>, vector<1x128xf32>
    %4 = vector.broadcast %3 : vector<1x128xf32> to vector<8x128xf32>
    %5 = arith.addf %2, %4 : vector<8x128xf32>
    %cst_5 = arith.constant 0.000000e+00 : f32
    %6 = vector.broadcast %cst_5 : f32 to vector<8x128xf32>
    %7 = arith.maximumf %5, %6 : vector<8x128xf32>
    %8 = arith.truncf %7 : vector<8x128xf32> to vector<8x128xbf16>
    %c0_6 = arith.constant 0 : index
    %c0_7 = arith.constant 0 : index
    %9 = vector.load %arg4[%c0_6, %c0_7] : memref<128x128xbf16, #tpu.memory_space<vmem>>, vector<128x128xbf16>
    %cst_8 = arith.constant dense<0.000000e+00> : vector<8x128xf32>
    %10 = tpu.matmul %8, %9, %cst_8 {dimension_numbers = #tpu.dot_dimension_numbers<[1], [0], [0], [1], [0, 0, 1, 1], [], []>} : vector<8x128xbf16>, vector<128x128xbf16>, vector<8x128xf32> -> vector<8x128xf32>
    %c0_9 = arith.constant 0 : index
    %c0_10 = arith.constant 0 : index
    %11 = vector.load %arg5[%c0_9, %c0_10] : memref<1x128xf32, #tpu.memory_space<vmem>>, vector<1x128xf32>
    %12 = vector.broadcast %11 : vector<1x128xf32> to vector<8x128xf32>
    %13 = arith.addf %10, %12 : vector<8x128xf32>
    %cst_11 = arith.constant 0.000000e+00 : f32
    %14 = vector.broadcast %cst_11 : f32 to vector<8x128xf32>
    %15 = arith.maximumf %13, %14 : vector<8x128xf32>
    %16 = arith.truncf %15 : vector<8x128xf32> to vector<8x128xbf16>
    %c0_12 = arith.constant 0 : index
    %c0_13 = arith.constant 0 : index
    %17 = vector.load %arg6[%c0_12, %c0_13] : memref<128x128xbf16, #tpu.memory_space<vmem>>, vector<128x128xbf16>
    %cst_14 = arith.constant dense<0.000000e+00> : vector<8x128xf32>
    %18 = tpu.matmul %16, %17, %cst_14 {dimension_numbers = #tpu.dot_dimension_numbers<[1], [0], [0], [1], [0, 0, 1, 1], [], []>} : vector<8x128xbf16>, vector<128x128xbf16>, vector<8x128xf32> -> vector<8x128xf32>
    %c0_15 = arith.constant 0 : index
    %c0_16 = arith.constant 0 : index
    %19 = vector.load %arg7[%c0_15, %c0_16] : memref<1x128xf32, #tpu.memory_space<vmem>>, vector<1x128xf32>
    %20 = vector.broadcast %19 : vector<1x128xf32> to vector<8x128xf32>
    %21 = arith.addf %18, %20 : vector<8x128xf32>
    %c0_17 = arith.constant 0 : index
    %c0_18 = arith.constant 0 : index
    %22 = vector.load %arg9[%c0_17, %c0_18] : memref<8x128xf32, #tpu.memory_space<vmem>>, vector<8x128xf32>
    tpu.vector_store %arg9[%c0_17, %c0_18], %21 {strides = array<i32>} : memref<8x128xf32, #tpu.memory_space<vmem>>, vector<8x128xf32>,
    %23 = tpu.iota {dimensions = array<i32: 1>} : vector<8x128xi32>
    %c10_i32 = arith.constant 10 : i32
    %24 = vector.broadcast %c10_i32 : i32 to vector<8x128xi32>
    %25 = arith.cmpi slt, %23, %24 : vector<8x128xi32>
    %cst_19 = arith.constant 0xFF800000 : f32
    %26 = vector.broadcast %cst_19 : f32 to vector<8x128xf32>
    %27 = arith.select %25, %21, %26 : vector<8x128xi1>, vector<8x128xf32>
    %cst_20 = arith.constant dense<0xFF800000> : vector<8xf32>
    %28 = vector.multi_reduction <maximumf>, %27, %cst_20 [1] : vector<8x128xf32> to vector<8xf32>
    %29 = vector.shape_cast %28 : vector<8xf32> to vector<8x1xf32>
    %30 = vector.broadcast %29 : vector<8x1xf32> to vector<8x128xf32>
    %31 = arith.subf %27, %30 : vector<8x128xf32>
    %32 = math.exp %31 : vector<8x128xf32>
    %cst_21 = arith.constant dense<0.000000e+00> : vector<8xf32>
    %33 = vector.multi_reduction <add>, %32, %cst_21 [1] : vector<8x128xf32> to vector<8xf32>
    %34 = vector.shape_cast %33 : vector<8xf32> to vector<8x1xf32>
    %35 = math.log %34 : vector<8x1xf32>
    %36 = arith.addf %29, %35 : vector<8x1xf32>
    %c0_22 = arith.constant 0 : index
    %c0_23 = arith.constant 0 : index
    %37 = vector.load %arg8[%c0_22, %c0_23] : memref<8x128xf32, #tpu.memory_space<vmem>>, vector<8x128xf32>
    %38 = arith.mulf %37, %21 : vector<8x128xf32>
    %cst_24 = arith.constant dense<0.000000e+00> : vector<8xf32>
    %39 = vector.multi_reduction <add>, %38, %cst_24 [1] : vector<8x128xf32> to vector<8xf32>
    %40 = vector.shape_cast %39 : vector<8xf32> to vector<8x1xf32>
    %41 = arith.subf %36, %40 : vector<8x1xf32>
    %42 = tpu.iota {dimensions = array<i32: 0>} : vector<8x1xi32>
    %c8_i32 = arith.constant 8 : i32
    %43 = arith.muli %arg0, %c8_i32 : i32
    %44 = vector.broadcast %43 : i32 to vector<8x1xi32>
    %45 = arith.addi %42, %44 : vector<8x1xi32>
    %c8_i32_25 = arith.constant 8 : i32
    %46 = vector.broadcast %c8_i32_25 : i32 to vector<8x1xi32>
    %47 = arith.cmpi slt, %45, %46 : vector<8x1xi32>
    %cst_26 = arith.constant 0.000000e+00 : f32
    %48 = vector.broadcast %cst_26 : f32 to vector<8x1xf32>
    %49 = arith.select %47, %41, %48 : vector<8x1xi1>, vector<8x1xf32>
    %50 = vector.shape_cast %49 : vector<8x1xf32> to vector<1x8x1xf32>
    %cst_27 = arith.constant dense<0.000000e+00> : vector<1xf32>
    %51 = vector.multi_reduction <add>, %50, %cst_27 [1, 2] : vector<1x8x1xf32> to vector<1xf32>
    %52 = vector.shape_cast %51 : vector<1xf32> to vector<1x1x1xf32>
    %53 = vector.extract %52[0, 0, 0] : f32 from vector<1x1x1xf32>
    %54 = vector.broadcast %53 : f32 to vector<1x8x128xf32>
    %c0_28 = arith.constant 0 : index
    %c0_29 = arith.constant 0 : index
    %c0_30 = arith.constant 0 : index
    %55 = vector.load %arg10[%c0_28, %c0_29, %c0_30] : memref<1x8x128xf32, #tpu.memory_space<vmem>>, vector<1x8x128xf32>
    tpu.vector_store %arg10[%c0_28, %c0_29, %c0_30], %54 {strides = array<i32>} : memref<1x8x128xf32, #tpu.memory_space<vmem>>, vector<1x8x128xf32>,
    return
  }
  func.func @transform_0(%arg0: i32) -> (i32, i32) {
    %c0_i32 = arith.constant 0 : i32
    %c0_i32_0 = arith.constant 0 : i32
    return %arg0, %c0_i32 : i32, i32
  }
  func.func @transform_1(%arg0: i32) -> (i32, i32) {
    %c0_i32 = arith.constant 0 : i32
    %c0_i32_0 = arith.constant 0 : i32
    %c0_i32_1 = arith.constant 0 : i32
    return %c0_i32, %c0_i32_0 : i32, i32
  }
  func.func @transform_2(%arg0: i32) -> (i32, i32) {
    %c0_i32 = arith.constant 0 : i32
    %c0_i32_0 = arith.constant 0 : i32
    %c0_i32_1 = arith.constant 0 : i32
    return %c0_i32, %c0_i32_0 : i32, i32
  }
  func.func @transform_3(%arg0: i32) -> (i32, i32) {
    %c0_i32 = arith.constant 0 : i32
    %c0_i32_0 = arith.constant 0 : i32
    %c0_i32_1 = arith.constant 0 : i32
    return %c0_i32, %c0_i32_0 : i32, i32
  }
  func.func @transform_4(%arg0: i32) -> (i32, i32) {
    %c0_i32 = arith.constant 0 : i32
    %c0_i32_0 = arith.constant 0 : i32
    %c0_i32_1 = arith.constant 0 : i32
    return %c0_i32, %c0_i32_0 : i32, i32
  }
  func.func @transform_5(%arg0: i32) -> (i32, i32) {
    %c0_i32 = arith.constant 0 : i32
    %c0_i32_0 = arith.constant 0 : i32
    %c0_i32_1 = arith.constant 0 : i32
    return %c0_i32, %c0_i32_0 : i32, i32
  }
  func.func @transform_6(%arg0: i32) -> (i32, i32) {
    %c0_i32 = arith.constant 0 : i32
    %c0_i32_0 = arith.constant 0 : i32
    %c0_i32_1 = arith.constant 0 : i32
    return %c0_i32, %c0_i32_0 : i32, i32
  }
  func.func @transform_7(%arg0: i32) -> (i32, i32) {
    %c0_i32 = arith.constant 0 : i32
    %c0_i32_0 = arith.constant 0 : i32
    return %arg0, %c0_i32 : i32, i32
  }
  func.func @transform_8(%arg0: i32) -> (i32, i32) {
    %c0_i32 = arith.constant 0 : i32
    %c0_i32_0 = arith.constant 0 : i32
    return %arg0, %c0_i32 : i32, i32
  }
  func.func @transform_9(%arg0: i32) -> (i32, i32, i32) {
    %c0_i32 = arith.constant 0 : i32
    %c0_i32_0 = arith.constant 0 : i32
    %c0_i32_1 = arith.constant 0 : i32
    return %arg0, %c0_i32, %c0_i32_0 : i32, i32, i32
  }
}

</mosaic_0001>

<llo_original>
// kernel: mlp_forward.1
$region0: #{mlp_forward.1}
  #allocation0 [shape = 'u32[]', space=smem, size = 0x4, offset = 0x4, fixed_abs, tag = 'smem constant byte address 0x4 - core index']
  #allocation1 [shape = 'u32[144,128]{1,0:T(1,128)}', space=vmem, size = 0x12000, scoped, tag = 'internal scratch']
  %s0 = inlined_call_operand.vmem [shape: bf16[8,896], index: 0, kind: input, shape index: {}]
  %s1 = inlined_call_operand.vmem [shape: bf16[896,128], index: 1, kind: input, shape index: {}]
  %s2 = inlined_call_operand.vmem [shape: f32[1,128], index: 2, kind: input, shape index: {}]
  %s3 = inlined_call_operand.vmem [shape: bf16[128,128], index: 3, kind: input, shape index: {}]
  %s4 = inlined_call_operand.vmem [shape: f32[1,128], index: 4, kind: input, shape index: {}]
  %s5 = inlined_call_operand.vmem [shape: bf16[128,128], index: 5, kind: input, shape index: {}]
  %s6 = inlined_call_operand.vmem [shape: f32[1,128], index: 6, kind: input, shape index: {}]
  %s7 = inlined_call_operand.vmem [shape: f32[8,128], index: 7, kind: input, shape index: {}]
  %s8 = inlined_call_operand.hbm [shape: f32[8,128], index: 8, kind: output, shape index: {0}]
  %s9 = inlined_call_operand.vmem [shape: f32[1,8,128], index: 9, kind: output, shape index: {1}]
  %10 = xla_tuple %s8, %s9
  %s11 = sld [smem:[#allocation0]]
  $region50: #{mlp_forward.1} parent=0
    _
  %s13 = ssub.s32 1, %s11
  %s14 = scalar_select 0, %s13, %s11
  $region1: #{mlp_forward.1} parent=0
    #allocation2 [shape = 'u8[4096]{0}', space=vmem, size = 0x1000, scoped, tag = 'output window, operand 0, single buffered']
    #allocation3 [shape = 's32[1]{0}', space=sflag, size = 0x4, scoped, tag = 'scoped memory for mlp_forward.1']
    %15 = vsyncpa [#allocation3], 0
    // Predicated region
    $region2: #{mlp_forward.1} parent=1 // pred_check
      _
    $region3: #{mlp_forward.1} parent=1 // pred_check_branch
      %17 = sbr.rel (0) target = $region5
    $region4: #{mlp_forward.1} parent=1 // pred_region
      _
    $region5: #{mlp_forward.1} parent=1 // pred_fallthru
      _
    // Predicated region
    $region6: #{mlp_forward.1} parent=1 // pred_check
      _
    $region7: #{mlp_forward.1} parent=1 // pred_check_branch
      %19 = sbr.rel (0) target = $region9
    $region8: #{mlp_forward.1} parent=1 // pred_region
      _
    $region9: #{mlp_forward.1} parent=1 // pred_fallthru
      _
    // Predicated region
    $region10: #{mlp_forward.1} parent=1 // pred_check
      _
    $region11: #{mlp_forward.1} parent=1 // pred_check_branch
      %21 = sbr.rel (0) target = $region13
    $region12: #{mlp_forward.1} parent=1 // pred_region
      _
    $region13: #{mlp_forward.1} parent=1 // pred_fallthru
      _
    // Predicated region
    $region14: #{mlp_forward.1} parent=1 // pred_check
      _
    $region15: #{mlp_forward.1} parent=1 // pred_check_branch
      %23 = sbr.rel (0) target = $region17
    $region16: #{mlp_forward.1} parent=1 // pred_region
      _
    $region17: #{mlp_forward.1} parent=1 // pred_fallthru
      _
    // Predicated region
    $region18: #{mlp_forward.1} parent=1 // pred_check
      _
    $region19: #{mlp_forward.1} parent=1 // pred_check_branch
      %25 = sbr.rel (0) target = $region21
    $region20: #{mlp_forward.1} parent=1 // pred_region
      _
    $region21: #{mlp_forward.1} parent=1 // pred_fallthru
      _
    // Predicated region
    $region22: #{mlp_forward.1} parent=1 // pred_check
      _
    $region23: #{mlp_forward.1} parent=1 // pred_check_branch
      %27 = sbr.rel (0) target = $region25
    $region24: #{mlp_forward.1} parent=1 // pred_region
      _
    $region25: #{mlp_forward.1} parent=1 // pred_fallthru
      _
    // Predicated region
    $region26: #{mlp_forward.1} parent=1 // pred_check
      _
    $region27: #{mlp_forward.1} parent=1 // pred_check_branch
      %29 = sbr.rel (0) target = $region29
    $region28: #{mlp_forward.1} parent=1 // pred_region
      _
    $region29: #{mlp_forward.1} parent=1 // pred_fallthru
      _
    // Predicated region
    $region30: #{mlp_forward.1} parent=1 // pred_check
      _
    $region31: #{mlp_forward.1} parent=1 // pred_check_branch
      %31 = sbr.rel (0) target = $region33
    $region32: #{mlp_forward.1} parent=1 // pred_region
      _
    $region33: #{mlp_forward.1} parent=1 // pred_fallthru
      _
    %v33 = vld [vmem:[%s0] sm:$0xff]
    %v34 = vld [vmem:[%s0 + $0x8] sm:$0xff]
    %v35 = vld [vmem:[%s0 + $0x10] sm:$0xff]
    %v36 = vld [vmem:[%s0 + $0x18] sm:$0xf]
    %v37 = vld [vmem:[%s1] sm:$0xf]
    %v38 = vld [vmem:[%s1 + $0x4] sm:$0xf]
    %v39 = vld [vmem:[%s1 + $0x8] sm:$0xf]
    %v40 = vld [vmem:[%s1 + $0xc] sm:$0xf]
    %v41 = vld [vmem:[%s1 + $0x10] sm:$0xf]
    %v42 = vld [vmem:[%s1 + $0x14] sm:$0xf]
    %v43 = vld [vmem:[%s1 + $0x18] sm:$0xf]
    %v44 = vld [vmem:[%s1 + $0x1c] sm:$0xf]
    %v45 = vld [vmem:[%s1 + $0x20] sm:$0xf]
    %v46 = vld [vmem:[%s1 + $0x24] sm:$0xf]
    %v47 = vld [vmem:[%s1 + $0x28] sm:$0xf]
    %v48 = vld [vmem:[%s1 + $0x2c] sm:$0xf]
    %v49 = vld [vmem:[%s1 + $0x30] sm:$0xf]
    %v50 = vld [vmem:[%s1 + $0x34] sm:$0xf]
    %v51 = vld [vmem:[%s1 + $0x38] sm:$0xf]
    %v52 = vld [vmem:[%s1 + $0x3c] sm:$0xf]
    %v53 = vld [vmem:[%s1 + $0x40] sm:$0xf]
    %v54 = vld [vmem:[%s1 + $0x44] sm:$0xf]
    %v55 = vld [vmem:[%s1 + $0x48] sm:$0xf]
    %v56 = vld [vmem:[%s1 + $0x4c] sm:$0xf]
    %v57 = vld [vmem:[%s1 + $0x50] sm:$0xf]
    %v58 = vld [vmem:[%s1 + $0x54] sm:$0xf]
    %v59 = vld [vmem:[%s1 + $0x58] sm:$0xf]
    %v60 = vld [vmem:[%s1 + $0x5c] sm:$0xf]
    %v61 = vld [vmem:[%s1 + $0x60] sm:$0xf]
    %v62 = vld [vmem:[%s1 + $0x64] sm:$0xf]
    %v63 = vld [vmem:[%s1 + $0x68] sm:$0xf]
    %v64 = vld [vmem:[%s1 + $0x6c] sm:$0xf]
    %v65 = vld [vmem:[%s1 + $0x70] sm:$0xf]
    %v66 = vld [vmem:[%s1 + $0x74] sm:$0xf]
    %v67 = vld [vmem:[%s1 + $0x78] sm:$0xf]
    %v68 = vld [vmem:[%s1 + $0x7c] sm:$0xf]
    %v69 = vld [vmem:[%s1 + $0x80] sm:$0xf]
    %v70 = vld [vmem:[%s1 + $0x84] sm:$0xf]
    %v71 = vld [vmem:[%s1 + $0x88] sm:$0xf]
    %v72 = vld [vmem:[%s1 + $0x8c] sm:$0xf]
    %v73 = vld [vmem:[%s1 + $0x90] sm:$0xf]
    %v74 = vld [vmem:[%s1 + $0x94] sm:$0xf]
    %v75 = vld [vmem:[%s1 + $0x98] sm:$0xf]
    %v76 = vld [vmem:[%s1 + $0x9c] sm:$0xf]
    %v77 = vld [vmem:[%s1 + $0xa0] sm:$0xf]
    %v78 = vld [vmem:[%s1 + $0xa4] sm:$0xf]
    %v79 = vld [vmem:[%s1 + $0xa8] sm:$0xf]
    %v80 = vld [vmem:[%s1 + $0xac] sm:$0xf]
    %v81 = vld [vmem:[%s1 + $0xb0] sm:$0xf]
    %v82 = vld [vmem:[%s1 + $0xb4] sm:$0xf]
    %v83 = vld [vmem:[%s1 + $0xb8] sm:$0xf]
    %v84 = vld [vmem:[%s1 + $0xbc] sm:$0xf]
    %v85 = vld [vmem:[%s1 + $0xc0] sm:$0xf]
    %v86 = vld [vmem:[%s1 + $0xc4] sm:$0xf]
    %v87 = vld [vmem:[%s1 + $0xc8] sm:$0xf]
    %v88 = vld [vmem:[%s1 + $0xcc] sm:$0xf]
    %v89 = vld [vmem:[%s1 + $0xd0] sm:$0xf]
    %v90 = vld [vmem:[%s1 + $0xd4] sm:$0xf]
    %v91 = vld [vmem:[%s1 + $0xd8] sm:$0xf]
    %v92 = vld [vmem:[%s1 + $0xdc] sm:$0xf]
    %v93 = vld [vmem:[%s1 + $0xe0] sm:$0xf]
    %v94 = vld [vmem:[%s1 + $0xe4] sm:$0xf]
    %v95 = vld [vmem:[%s1 + $0xe8] sm:$0xf]
    %v96 = vld [vmem:[%s1 + $0xec] sm:$0xf]
    %v97 = vld [vmem:[%s1 + $0xf0] sm:$0xf]
    %v98 = vld [vmem:[%s1 + $0xf4] sm:$0xf]
    %v99 = vld [vmem:[%s1 + $0xf8] sm:$0xf]
    %v100 = vld [vmem:[%s1 + $0xfc] sm:$0xf]
    %v101 = vld [vmem:[%s1 + $0x100] sm:$0xf]
    %v102 = vld [vmem:[%s1 + $0x104] sm:$0xf]
    %v103 = vld [vmem:[%s1 + $0x108] sm:$0xf]
    %v104 = vld [vmem:[%s1 + $0x10c] sm:$0xf]
    %v105 = vld [vmem:[%s1 + $0x110] sm:$0xf]
    %v106 = vld [vmem:[%s1 + $0x114] sm:$0xf]
    %v107 = vld [vmem:[%s1 + $0x118] sm:$0xf]
    %v108 = vld [vmem:[%s1 + $0x11c] sm:$0xf]
    %v109 = vld [vmem:[%s1 + $0x120] sm:$0xf]
    %v110 = vld [vmem:[%s1 + $0x124] sm:$0xf]
    %v111 = vld [vmem:[%s1 + $0x128] sm:$0xf]
    %v112 = vld [vmem:[%s1 + $0x12c] sm:$0xf]
    %v113 = vld [vmem:[%s1 + $0x130] sm:$0xf]
    %v114 = vld [vmem:[%s1 + $0x134] sm:$0xf]
    %v115 = vld [vmem:[%s1 + $0x138] sm:$0xf]
    %v116 = vld [vmem:[%s1 + $0x13c] sm:$0xf]
    %v117 = vld [vmem:[%s1 + $0x140] sm:$0xf]
    %v118 = vld [vmem:[%s1 + $0x144] sm:$0xf]
    %v119 = vld [vmem:[%s1 + $0x148] sm:$0xf]
    %v120 = vld [vmem:[%s1 + $0x14c] sm:$0xf]
    %v121 = vld [vmem:[%s1 + $0x150] sm:$0xf]
    %v122 = vld [vmem:[%s1 + $0x154] sm:$0xf]
    %v123 = vld [vmem:[%s1 + $0x158] sm:$0xf]
    %v124 = vld [vmem:[%s1 + $0x15c] sm:$0xf]
    %v125 = vld [vmem:[%s1 + $0x160] sm:$0xf]
    %v126 = vld [vmem:[%s1 + $0x164] sm:$0xf]
    %v127 = vld [vmem:[%s1 + $0x168] sm:$0xf]
    %v128 = vld [vmem:[%s1 + $0x16c] sm:$0xf]
    %v129 = vld [vmem:[%s1 + $0x170] sm:$0xf]
    %v130 = vld [vmem:[%s1 + $0x174] sm:$0xf]
    %v131 = vld [vmem:[%s1 + $0x178] sm:$0xf]
    %v132 = vld [vmem:[%s1 + $0x17c] sm:$0xf]
    %v133 = vld [vmem:[%s1 + $0x180] sm:$0xf]
    %v134 = vld [vmem:[%s1 + $0x184] sm:$0xf]
    %v135 = vld [vmem:[%s1 + $0x188] sm:$0xf]
    %v136 = vld [vmem:[%s1 + $0x18c] sm:$0xf]
    %v137 = vld [vmem:[%s1 + $0x190] sm:$0xf]
    %v138 = vld [vmem:[%s1 + $0x194] sm:$0xf]
    %v139 = vld [vmem:[%s1 + $0x198] sm:$0xf]
    %v140 = vld [vmem:[%s1 + $0x19c] sm:$0xf]
    %v141 = vld [vmem:[%s1 + $0x1a0] sm:$0xf]
    %v142 = vld [vmem:[%s1 + $0x1a4] sm:$0xf]
    %v143 = vld [vmem:[%s1 + $0x1a8] sm:$0xf]
    %v144 = vld [vmem:[%s1 + $0x1ac] sm:$0xf]
    %v145 = vld [vmem:[%s1 + $0x1b0] sm:$0xf]
    %v146 = vld [vmem:[%s1 + $0x1b4] sm:$0xf]
    %v147 = vld [vmem:[%s1 + $0x1b8] sm:$0xf]
    %v148 = vld [vmem:[%s1 + $0x1bc] sm:$0xf]
    %v149 = vld [vmem:[%s2] sm:$0x1]
    %v151 = vlaneseq
    %v152 = vshrl.u32 %v151, 7
    %v153 = vsub.s32 0, %v152
    %v154 = vrot.slane %v149, %v153
    %v160 = vunpack.c.l.b16 %v33
    %v161 = vunpack.c.h.b16 %v33
    %v162 = vunpack.c.l.b16 %v34
    %v163 = vunpack.c.h.b16 %v34
    %v164 = vunpack.c.l.b16 %v35
    %v165 = vunpack.c.h.b16 %v35
    %v166 = vunpack.c.l.b16 %v36
    %v167 = vpack.c.b16 %v160, %v160
    %v168 = vpack.c.b16 %v161, %v161
    %v169 = vpack.c.b16 %v162, %v162
    %v170 = vpack.c.b16 %v163, %v163
    %v171 = vpack.c.b16 %v164, %v164
    %v172 = vpack.c.b16 %v165, %v165
    %v173 = vpack.c.b16 %v166, %v166
    %v293 = vunpack.c.l.b16 %v37
    %v294 = vunpack.c.l.b16 %v38
    %v295 = vunpack.c.l.b16 %v39
    %v296 = vunpack.c.l.b16 %v40
    %v297 = vunpack.c.l.b16 %v41
    %v298 = vunpack.c.l.b16 %v42
    %v299 = vunpack.c.l.b16 %v43
    %v300 = vunpack.c.l.b16 %v44
    %v301 = vunpack.c.l.b16 %v45
    %v302 = vunpack.c.l.b16 %v46
    %v303 = vunpack.c.l.b16 %v47
    %v304 = vunpack.c.l.b16 %v48
    %v305 = vunpack.c.l.b16 %v49
    %v306 = vunpack.c.l.b16 %v50
    %v307 = vunpack.c.l.b16 %v51
    %v308 = vunpack.c.l.b16 %v52
    %v309 = vunpack.c.l.b16 %v53
    %v310 = vunpack.c.l.b16 %v54
    %v311 = vunpack.c.l.b16 %v55
    %v312 = vunpack.c.l.b16 %v56
    %v313 = vunpack.c.l.b16 %v57
    %v314 = vunpack.c.l.b16 %v58
    %v315 = vunpack.c.l.b16 %v59
    %v316 = vunpack.c.l.b16 %v60
    %v317 = vunpack.c.l.b16 %v61
    %v318 = vunpack.c.l.b16 %v62
    %v319 = vunpack.c.l.b16 %v63
    %v320 = vunpack.c.l.b16 %v64
    %v321 = vunpack.c.l.b16 %v65
    %v322 = vunpack.c.l.b16 %v66
    %v323 = vunpack.c.l.b16 %v67
    %v324 = vunpack.c.l.b16 %v68
    %v325 = vunpack.c.l.b16 %v69
    %v326 = vunpack.c.l.b16 %v70
    %v327 = vunpack.c.l.b16 %v71
    %v328 = vunpack.c.l.b16 %v72
    %v329 = vunpack.c.l.b16 %v73
    %v330 = vunpack.c.l.b16 %v74
    %v331 = vunpack.c.l.b16 %v75
    %v332 = vunpack.c.l.b16 %v76
    %v333 = vunpack.c.l.b16 %v77
    %v334 = vunpack.c.l.b16 %v78
    %v335 = vunpack.c.l.b16 %v79
    %v336 = vunpack.c.l.b16 %v80
    %v337 = vunpack.c.l.b16 %v81
    %v338 = vunpack.c.l.b16 %v82
    %v339 = vunpack.c.l.b16 %v83
    %v340 = vunpack.c.l.b16 %v84
    %v341 = vunpack.c.l.b16 %v85
    %v342 = vunpack.c.l.b16 %v86
    %v343 = vunpack.c.l.b16 %v87
    %v344 = vunpack.c.l.b16 %v88
    %v345 = vunpack.c.l.b16 %v89
    %v346 = vunpack.c.l.b16 %v90
    %v347 = vunpack.c.l.b16 %v91
    %v348 = vunpack.c.l.b16 %v92
    %v349 = vunpack.c.l.b16 %v93
    %v350 = vunpack.c.l.b16 %v94
    %v351 = vunpack.c.l.b16 %v95
    %v352 = vunpack.c.l.b16 %v96
    %v353 = vunpack.c.l.b16 %v97
    %v354 = vunpack.c.l.b16 %v98
    %v355 = vunpack.c.l.b16 %v99
    %v356 = vunpack.c.l.b16 %v100
    %v357 = vunpack.c.l.b16 %v101
    %v358 = vunpack.c.l.b16 %v102
    %v359 = vunpack.c.l.b16 %v103
    %v360 = vunpack.c.l.b16 %v104
    %v361 = vunpack.c.l.b16 %v105
    %v362 = vunpack.c.l.b16 %v106
    %v363 = vunpack.c.l.b16 %v107
    %v364 = vunpack.c.l.b16 %v108
    %v365 = vunpack.c.l.b16 %v109
    %v366 = vunpack.c.l.b16 %v110
    %v367 = vunpack.c.l.b16 %v111
    %v368 = vunpack.c.l.b16 %v112
    %v369 = vunpack.c.l.b16 %v113
    %v370 = vunpack.c.l.b16 %v114
    %v371 = vunpack.c.l.b16 %v115
    %v372 = vunpack.c.l.b16 %v116
    %v373 = vunpack.c.l.b16 %v117
    %v374 = vunpack.c.l.b16 %v118
    %v375 = vunpack.c.l.b16 %v119
    %v376 = vunpack.c.l.b16 %v120
    %v377 = vunpack.c.l.b16 %v121
    %v378 = vunpack.c.l.b16 %v122
    %v379 = vunpack.c.l.b16 %v123
    %v380 = vunpack.c.l.b16 %v124
    %v381 = vunpack.c.l.b16 %v125
    %v382 = vunpack.c.l.b16 %v126
    %v383 = vunpack.c.l.b16 %v127
    %v384 = vunpack.c.l.b16 %v128
    %v385 = vunpack.c.l.b16 %v129
    %v386 = vunpack.c.l.b16 %v130
    %v387 = vunpack.c.l.b16 %v131
    %v388 = vunpack.c.l.b16 %v132
    %v389 = vunpack.c.l.b16 %v133
    %v390 = vunpack.c.l.b16 %v134
    %v391 = vunpack.c.l.b16 %v135
    %v392 = vunpack.c.l.b16 %v136
    %v393 = vunpack.c.l.b16 %v137
    %v394 = vunpack.c.l.b16 %v138
    %v395 = vunpack.c.l.b16 %v139
    %v396 = vunpack.c.l.b16 %v140
    %v397 = vunpack.c.l.b16 %v141
    %v398 = vunpack.c.l.b16 %v142
    %v399 = vunpack.c.l.b16 %v143
    %v400 = vunpack.c.l.b16 %v144
    %v401 = vunpack.c.l.b16 %v145
    %v402 = vunpack.c.l.b16 %v146
    %v403 = vunpack.c.l.b16 %v147
    %v404 = vunpack.c.l.b16 %v148
    %v405 = vpack.c.b16 %v294, %v293
    %v406 = vpack.c.b16 %v296, %v295
    %v407 = vpack.c.b16 %v298, %v297
    %v408 = vpack.c.b16 %v300, %v299
    %v409 = vpack.c.b16 %v302, %v301
    %v410 = vpack.c.b16 %v304, %v303
    %v411 = vpack.c.b16 %v306, %v305
    %v412 = vpack.c.b16 %v308, %v307
    %v413 = vpack.c.b16 %v310, %v309
    %v414 = vpack.c.b16 %v312, %v311
    %v415 = vpack.c.b16 %v314, %v313
    %v416 = vpack.c.b16 %v316, %v315
    %v417 = vpack.c.b16 %v318, %v317
    %v418 = vpack.c.b16 %v320, %v319
    %v419 = vpack.c.b16 %v322, %v321
    %v420 = vpack.c.b16 %v324, %v323
    %v421 = vpack.c.b16 %v326, %v325
    %v422 = vpack.c.b16 %v328, %v327
    %v423 = vpack.c.b16 %v330, %v329
    %v424 = vpack.c.b16 %v332, %v331
    %v425 = vpack.c.b16 %v334, %v333
    %v426 = vpack.c.b16 %v336, %v335
    %v427 = vpack.c.b16 %v338, %v337
    %v428 = vpack.c.b16 %v340, %v339
    %v429 = vpack.c.b16 %v342, %v341
    %v430 = vpack.c.b16 %v344, %v343
    %v431 = vpack.c.b16 %v346, %v345
    %v432 = vpack.c.b16 %v348, %v347
    %v433 = vpack.c.b16 %v350, %v349
    %v434 = vpack.c.b16 %v352, %v351
    %v435 = vpack.c.b16 %v354, %v353
    %v436 = vpack.c.b16 %v356, %v355
    %v437 = vpack.c.b16 %v358, %v357
    %v438 = vpack.c.b16 %v360, %v359
    %v439 = vpack.c.b16 %v362, %v361
    %v440 = vpack.c.b16 %v364, %v363
    %v441 = vpack.c.b16 %v366, %v365
    %v442 = vpack.c.b16 %v368, %v367
    %v443 = vpack.c.b16 %v370, %v369
    %v444 = vpack.c.b16 %v372, %v371
    %v445 = vpack.c.b16 %v374, %v373
    %v446 = vpack.c.b16 %v376, %v375
    %v447 = vpack.c.b16 %v378, %v377
    %v448 = vpack.c.b16 %v380, %v379
    %v449 = vpack.c.b16 %v382, %v381
    %v450 = vpack.c.b16 %v384, %v383
    %v451 = vpack.c.b16 %v386, %v385
    %v452 = vpack.c.b16 %v388, %v387
    %v453 = vpack.c.b16 %v390, %v389
    %v454 = vpack.c.b16 %v392, %v391
    %v455 = vpack.c.b16 %v394, %v393
    %v456 = vpack.c.b16 %v396, %v395
    %v457 = vpack.c.b16 %v398, %v397
    %v458 = vpack.c.b16 %v400, %v399
    %v459 = vpack.c.b16 %v402, %v401
    %v460 = vpack.c.b16 %v404, %v403
    %517 = vmatprep.subr.bf16.mxu0 0
    %518 = vmatpush1.bf16.msra.mxu0 %v405
    %519 = vmatprep.subr.bf16.mxu0 0
    %520 = vmatpush1.bf16.msra.mxu0 %v406
    %521 = vmatprep.subr.bf16.mxu0 0
    %522 = vmatpush1.bf16.msra.mxu0 %v407
    %523 = vmatprep.subr.bf16.mxu0 0
    %524 = vmatpush1.bf16.msra.mxu0 %v408
    %525 = vmatprep.subr.bf16.mxu0 0
    %526 = vmatpush1.bf16.msra.mxu0 %v409
    %527 = vmatprep.subr.bf16.mxu0 0
    %528 = vmatpush1.bf16.msra.mxu0 %v410
    %529 = vmatprep.subr.bf16.mxu0 0
    %530 = vmatpush1.bf16.msra.mxu0 %v411
    %531 = vmatprep.subr.bf16.mxu0 0
    %532 = vmatpush1.bf16.msra.mxu0 %v412
    %533 = vmatprep.subr.bf16.mxu0 0
    %534 = vmatpush1.bf16.msra.mxu0 %v413
    %535 = vmatprep.subr.bf16.mxu0 0
    %536 = vmatpush1.bf16.msra.mxu0 %v414
    %537 = vmatprep.subr.bf16.mxu0 0
    %538 = vmatpush1.bf16.msra.mxu0 %v415
    %539 = vmatprep.subr.bf16.mxu0 0
    %540 = vmatpush1.bf16.msra.mxu0 %v416
    %541 = vmatprep.subr.bf16.mxu0 0
    %542 = vmatpush1.bf16.msra.mxu0 %v417
    %543 = vmatprep.subr.bf16.mxu0 0
    %544 = vmatpush1.bf16.msra.mxu0 %v418
    %545 = vmatprep.subr.bf16.mxu0 0
    %546 = vmatpush1.bf16.msra.mxu0 %v419
    %547 = vmatprep.subr.bf16.mxu0 0
    %548 = vmatpush1.bf16.msra.mxu0 %v420
    %549 = vmatprep.mubr.bf16.mxu0 %v168
    %550 = vmatmul.mubr.bf16.gmra.mrb[0].mxu0 %v167
    %v551 = vpop.f32.mrb[0].mxu0
    %v552 = vadd.f32 %v154, %v551
    %v553 = vpop.f32.mrb[0].mxu0
    %v554 = vpop.f32.mrb[0].mxu0
    %v555 = vpop.f32.mrb[0].mxu0
    %556 = vdwg.mxu0
    %557 = vmatprep.subr.bf16.mxu0 0
    %558 = vmatpush1.bf16.msra.mxu0 %v421
    %559 = vmatprep.subr.bf16.mxu0 0
    %560 = vmatpush1.bf16.msra.mxu0 %v422
    %561 = vmatprep.subr.bf16.mxu0 0
    %562 = vmatpush1.bf16.msra.mxu0 %v423
    %563 = vmatprep.subr.bf16.mxu0 0
    %564 = vmatpush1.bf16.msra.mxu0 %v424
    %565 = vmatprep.subr.bf16.mxu0 0
    %566 = vmatpush1.bf16.msra.mxu0 %v425
    %567 = vmatprep.subr.bf16.mxu0 0
    %568 = vmatpush1.bf16.msra.mxu0 %v426
    %569 = vmatprep.subr.bf16.mxu0 0
    %570 = vmatpush1.bf16.msra.mxu0 %v427
    %571 = vmatprep.subr.bf16.mxu0 0
    %572 = vmatpush1.bf16.msra.mxu0 %v428
    %573 = vmatprep.subr.bf16.mxu0 0
    %574 = vmatpush1.bf16.msra.mxu0 %v429
    %575 = vmatprep.subr.bf16.mxu0 0
    %576 = vmatpush1.bf16.msra.mxu0 %v430
    %577 = vmatprep.subr.bf16.mxu0 0
    %578 = vmatpush1.bf16.msra.mxu0 %v431
    %579 = vmatprep.subr.bf16.mxu0 0
    %580 = vmatpush1.bf16.msra.mxu0 %v432
    %581 = vmatprep.subr.bf16.mxu0 0
    %582 = vmatpush1.bf16.msra.mxu0 %v433
    %583 = vmatprep.subr.bf16.mxu0 0
    %584 = vmatpush1.bf16.msra.mxu0 %v434
    %585 = vmatprep.subr.bf16.mxu0 0
    %586 = vmatpush1.bf16.msra.mxu0 %v435
    %587 = vmatprep.subr.bf16.mxu0 0
    %588 = vmatpush1.bf16.msra.mxu0 %v436
    %589 = vmatprep.mubr.bf16.mxu0 %v170
    %590 = vmatmul.mubr.bf16.gmra.mrb[0].mxu0 %v169
    %v591 = vpop.f32.mrb[0].mxu0
    %v592 = vadd.f32 %v552, %v591
    %v593 = vpop.f32.mrb[0].mxu0
    %v594 = vpop.f32.mrb[0].mxu0
    %v595 = vpop.f32.mrb[0].mxu0
    %596 = vdwg.mxu0
    %597 = vmatprep.subr.bf16.mxu0 0
    %598 = vmatpush1.bf16.msra.mxu0 %v437
    %599 = vmatprep.subr.bf16.mxu0 0
    %600 = vmatpush1.bf16.msra.mxu0 %v438
    %601 = vmatprep.subr.bf16.mxu0 0
    %602 = vmatpush1.bf16.msra.mxu0 %v439
    %603 = vmatprep.subr.bf16.mxu0 0
    %604 = vmatpush1.bf16.msra.mxu0 %v440
    %605 = vmatprep.subr.bf16.mxu0 0
    %606 = vmatpush1.bf16.msra.mxu0 %v441
    %607 = vmatprep.subr.bf16.mxu0 0
    %608 = vmatpush1.bf16.msra.mxu0 %v442
    %609 = vmatprep.subr.bf16.mxu0 0
    %610 = vmatpush1.bf16.msra.mxu0 %v443
    %611 = vmatprep.subr.bf16.mxu0 0
    %612 = vmatpush1.bf16.msra.mxu0 %v444
    %613 = vmatprep.subr.bf16.mxu0 0
    %614 = vmatpush1.bf16.msra.mxu0 %v445
    %615 = vmatprep.subr.bf16.mxu0 0
    %616 = vmatpush1.bf16.msra.mxu0 %v446
    %617 = vmatprep.subr.bf16.mxu0 0
    %618 = vmatpush1.bf16.msra.mxu0 %v447
    %619 = vmatprep.subr.bf16.mxu0 0
    %620 = vmatpush1.bf16.msra.mxu0 %v448
    %621 = vmatprep.subr.bf16.mxu0 0
    %622 = vmatpush1.bf16.msra.mxu0 %v449
    %623 = vmatprep.subr.bf16.mxu0 0
    %624 = vmatpush1.bf16.msra.mxu0 %v450
    %625 = vmatprep.subr.bf16.mxu0 0
    %626 = vmatpush1.bf16.msra.mxu0 %v451
    %627 = vmatprep.subr.bf16.mxu0 0
    %628 = vmatpush1.bf16.msra.mxu0 %v452
    %629 = vmatprep.mubr.bf16.mxu0 %v172
    %630 = vmatmul.mubr.bf16.gmra.mrb[0].mxu0 %v171
    %v631 = vpop.f32.mrb[0].mxu0
    %v632 = vadd.f32 %v592, %v631
    %v633 = vpop.f32.mrb[0].mxu0
    %v634 = vpop.f32.mrb[0].mxu0
    %v635 = vpop.f32.mrb[0].mxu0
    %636 = vdwg.mxu0
    %637 = vmatprep.subr.bf16.mxu0 0
    %638 = vmatpush1.bf16.msra.mxu0 %v453
    %639 = vmatprep.subr.bf16.mxu0 0
    %640 = vmatpush1.bf16.msra.mxu0 %v454
    %641 = vmatprep.subr.bf16.mxu0 0
    %642 = vmatpush1.bf16.msra.mxu0 %v455
    %643 = vmatprep.subr.bf16.mxu0 0
    %644 = vmatpush1.bf16.msra.mxu0 %v456
    %645 = vmatprep.subr.bf16.mxu0 0
    %646 = vmatpush1.bf16.msra.mxu0 %v457
    %647 = vmatprep.subr.bf16.mxu0 0
    %648 = vmatpush1.bf16.msra.mxu0 %v458
    %649 = vmatprep.subr.bf16.mxu0 0
    %650 = vmatpush1.bf16.msra.mxu0 %v459
    %651 = vmatprep.subr.bf16.mxu0 0
    %652 = vmatpush1.bf16.msra.mxu0 %v460
    %653 = vmatprep.subr.bf16.mxu0 0
    %654 = vmatpush1.bf16.msra.mxu0 0
    %655 = vmatprep.subr.bf16.mxu0 0
    %656 = vmatpush1.bf16.msra.mxu0 0
    %657 = vmatprep.subr.bf16.mxu0 0
    %658 = vmatpush1.bf16.msra.mxu0 0
    %659 = vmatprep.subr.bf16.mxu0 0
    %660 = vmatpush1.bf16.msra.mxu0 0
    %661 = vmatprep.subr.bf16.mxu0 0
    %662 = vmatpush1.bf16.msra.mxu0 0
    %663 = vmatprep.subr.bf16.mxu0 0
    %664 = vmatpush1.bf16.msra.mxu0 0
    %665 = vmatprep.subr.bf16.mxu0 0
    %666 = vmatpush1.bf16.msra.mxu0 0
    %667 = vmatprep.subr.bf16.mxu0 0
    %668 = vmatpush1.bf16.msra.mxu0 0
    %669 = vmatprep.mubr.bf16.mxu0 0
    %670 = vmatmul.mubr.bf16.gmra.mrb[0].mxu0 %v173
    %v671 = vpop.f32.mrb[0].mxu0
    %v672 = vadd.f32 %v632, %v671
    %v673 = vpop.f32.mrb[0].mxu0
    %v674 = vpop.f32.mrb[0].mxu0
    %v675 = vpop.f32.mrb[0].mxu0
    %676 = vdwg.mxu0
    %v677 = vmax.f32 %v672, 0.0
    %v678 = vpack.c.bf16 %v677, %v677
    %v679 = vld [vmem:[%s3] sm:$0xf]
    %v680 = vld [vmem:[%s3 + $0x4] sm:$0xf]
    %v681 = vld [vmem:[%s3 + $0x8] sm:$0xf]
    %v682 = vld [vmem:[%s3 + $0xc] sm:$0xf]
    %v683 = vld [vmem:[%s3 + $0x10] sm:$0xf]
    %v684 = vld [vmem:[%s3 + $0x14] sm:$0xf]
    %v685 = vld [vmem:[%s3 + $0x18] sm:$0xf]
    %v686 = vld [vmem:[%s3 + $0x1c] sm:$0xf]
    %v687 = vld [vmem:[%s3 + $0x20] sm:$0xf]
    %v688 = vld [vmem:[%s3 + $0x24] sm:$0xf]
    %v689 = vld [vmem:[%s3 + $0x28] sm:$0xf]
    %v690 = vld [vmem:[%s3 + $0x2c] sm:$0xf]
    %v691 = vld [vmem:[%s3 + $0x30] sm:$0xf]
    %v692 = vld [vmem:[%s3 + $0x34] sm:$0xf]
    %v693 = vld [vmem:[%s3 + $0x38] sm:$0xf]
    %v694 = vld [vmem:[%s3 + $0x3c] sm:$0xf]
    %v695 = vld [vmem:[%s4] sm:$0x1]
    %v697 = vlaneseq
    %v698 = vshrl.u32 %v697, 7
    %v699 = vsub.s32 0, %v698
    %v700 = vrot.slane %v695, %v699
    %v718 = vunpack.c.l.b16 %v679
    %v719 = vunpack.c.l.b16 %v680
    %v720 = vunpack.c.l.b16 %v681
    %v721 = vunpack.c.l.b16 %v682
    %v722 = vunpack.c.l.b16 %v683
    %v723 = vunpack.c.l.b16 %v684
    %v724 = vunpack.c.l.b16 %v685
    %v725 = vunpack.c.l.b16 %v686
    %v726 = vunpack.c.l.b16 %v687
    %v727 = vunpack.c.l.b16 %v688
    %v728 = vunpack.c.l.b16 %v689
    %v729 = vunpack.c.l.b16 %v690
    %v730 = vunpack.c.l.b16 %v691
    %v731 = vunpack.c.l.b16 %v692
    %v732 = vunpack.c.l.b16 %v693
    %v733 = vunpack.c.l.b16 %v694
    %v734 = vpack.c.b16 %v719, %v718
    %v735 = vpack.c.b16 %v721, %v720
    %v736 = vpack.c.b16 %v723, %v722
    %v737 = vpack.c.b16 %v725, %v724
    %v738 = vpack.c.b16 %v727, %v726
    %v739 = vpack.c.b16 %v729, %v728
    %v740 = vpack.c.b16 %v731, %v730
    %v741 = vpack.c.b16 %v733, %v732
    %750 = vmatprep.subr.bf16.mxu0 0
    %751 = vmatpush1.bf16.msra.mxu0 %v734
    %752 = vmatprep.subr.bf16.mxu0 0
    %753 = vmatpush1.bf16.msra.mxu0 %v735
    %754 = vmatprep.subr.bf16.mxu0 0
    %755 = vmatpush1.bf16.msra.mxu0 %v736
    %756 = vmatprep.subr.bf16.mxu0 0
    %757 = vmatpush1.bf16.msra.mxu0 %v737
    %758 = vmatprep.subr.bf16.mxu0 0
    %759 = vmatpush1.bf16.msra.mxu0 %v738
    %760 = vmatprep.subr.bf16.mxu0 0
    %761 = vmatpush1.bf16.msra.mxu0 %v739
    %762 = vmatprep.subr.bf16.mxu0 0
    %763 = vmatpush1.bf16.msra.mxu0 %v740
    %764 = vmatprep.subr.bf16.mxu0 0
    %765 = vmatpush1.bf16.msra.mxu0 %v741
    %766 = vmatprep.subr.bf16.mxu0 0
    %767 = vmatpush1.bf16.msra.mxu0 0
    %768 = vmatprep.subr.bf16.mxu0 0
    %769 = vmatpush1.bf16.msra.mxu0 0
    %770 = vmatprep.subr.bf16.mxu0 0
    %771 = vmatpush1.bf16.msra.mxu0 0
    %772 = vmatprep.subr.bf16.mxu0 0
    %773 = vmatpush1.bf16.msra.mxu0 0
    %774 = vmatprep.subr.bf16.mxu0 0
    %775 = vmatpush1.bf16.msra.mxu0 0
    %776 = vmatprep.subr.bf16.mxu0 0
    %777 = vmatpush1.bf16.msra.mxu0 0
    %778 = vmatprep.subr.bf16.mxu0 0
    %779 = vmatpush1.bf16.msra.mxu0 0
    %780 = vmatprep.subr.bf16.mxu0 0
    %781 = vmatpush1.bf16.msra.mxu0 0
    %782 = vmatprep.mubr.bf16.mxu0 0
    %783 = vmatmul.mubr.bf16.gmra.mrb[0].mxu0 %v678
    %v784 = vpop.f32.mrb[0].mxu0
    %v785 = vadd.f32 %v700, %v784
    %v786 = vpop.f32.mrb[0].mxu0
    %v787 = vpop.f32.mrb[0].mxu0
    %v788 = vpop.f32.mrb[0].mxu0
    %789 = vdwg.mxu0
    %v790 = vmax.f32 %v785, 0.0
    %v791 = vpack.c.bf16 %v790, %v790
    %v792 = vld [vmem:[%s5] sm:$0xf]
    %v793 = vld [vmem:[%s5 + $0x4] sm:$0xf]
    %v794 = vld [vmem:[%s5 + $0x8] sm:$0xf]
    %v795 = vld [vmem:[%s5 + $0xc] sm:$0xf]
    %v796 = vld [vmem:[%s5 + $0x10] sm:$0xf]
    %v797 = vld [vmem:[%s5 + $0x14] sm:$0xf]
    %v798 = vld [vmem:[%s5 + $0x18] sm:$0xf]
    %v799 = vld [vmem:[%s5 + $0x1c] sm:$0xf]
    %v800 = vld [vmem:[%s5 + $0x20] sm:$0xf]
    %v801 = vld [vmem:[%s5 + $0x24] sm:$0xf]
    %v802 = vld [vmem:[%s5 + $0x28] sm:$0xf]
    %v803 = vld [vmem:[%s5 + $0x2c] sm:$0xf]
    %v804 = vld [vmem:[%s5 + $0x30] sm:$0xf]
    %v805 = vld [vmem:[%s5 + $0x34] sm:$0xf]
    %v806 = vld [vmem:[%s5 + $0x38] sm:$0xf]
    %v807 = vld [vmem:[%s5 + $0x3c] sm:$0xf]
    %v808 = vld [vmem:[%s6] sm:$0x1]
    %v810 = vlaneseq
    %v811 = vshrl.u32 %v810, 7
    %v812 = vsub.s32 0, %v811
    %v813 = vrot.slane %v808, %v812
    %v831 = vunpack.c.l.b16 %v792
    %v832 = vunpack.c.l.b16 %v793
    %v833 = vunpack.c.l.b16 %v794
    %v834 = vunpack.c.l.b16 %v795
    %v835 = vunpack.c.l.b16 %v796
    %v836 = vunpack.c.l.b16 %v797
    %v837 = vunpack.c.l.b16 %v798
    %v838 = vunpack.c.l.b16 %v799
    %v839 = vunpack.c.l.b16 %v800
    %v840 = vunpack.c.l.b16 %v801
    %v841 = vunpack.c.l.b16 %v802
    %v842 = vunpack.c.l.b16 %v803
    %v843 = vunpack.c.l.b16 %v804
    %v844 = vunpack.c.l.b16 %v805
    %v845 = vunpack.c.l.b16 %v806
    %v846 = vunpack.c.l.b16 %v807
    %v847 = vpack.c.b16 %v832, %v831
    %v848 = vpack.c.b16 %v834, %v833
    %v849 = vpack.c.b16 %v836, %v835
    %v850 = vpack.c.b16 %v838, %v837
    %v851 = vpack.c.b16 %v840, %v839
    %v852 = vpack.c.b16 %v842, %v841
    %v853 = vpack.c.b16 %v844, %v843
    %v854 = vpack.c.b16 %v846, %v845
    %863 = vmatprep.subr.bf16.mxu0 0
    %864 = vmatpush1.bf16.msra.mxu0 %v847
    %865 = vmatprep.subr.bf16.mxu0 0
    %866 = vmatpush1.bf16.msra.mxu0 %v848
    %867 = vmatprep.subr.bf16.mxu0 0
    %868 = vmatpush1.bf16.msra.mxu0 %v849
    %869 = vmatprep.subr.bf16.mxu0 0
    %870 = vmatpush1.bf16.msra.mxu0 %v850
    %871 = vmatprep.subr.bf16.mxu0 0
    %872 = vmatpush1.bf16.msra.mxu0 %v851
    %873 = vmatprep.subr.bf16.mxu0 0
    %874 = vmatpush1.bf16.msra.mxu0 %v852
    %875 = vmatprep.subr.bf16.mxu0 0
    %876 = vmatpush1.bf16.msra.mxu0 %v853
    %877 = vmatprep.subr.bf16.mxu0 0
    %878 = vmatpush1.bf16.msra.mxu0 %v854
    %879 = vmatprep.subr.bf16.mxu0 0
    %880 = vmatpush1.bf16.msra.mxu0 0
    %881 = vmatprep.subr.bf16.mxu0 0
    %882 = vmatpush1.bf16.msra.mxu0 0
    %883 = vmatprep.subr.bf16.mxu0 0
    %884 = vmatpush1.bf16.msra.mxu0 0
    %885 = vmatprep.subr.bf16.mxu0 0
    %886 = vmatpush1.bf16.msra.mxu0 0
    %887 = vmatprep.subr.bf16.mxu0 0
    %888 = vmatpush1.bf16.msra.mxu0 0
    %889 = vmatprep.subr.bf16.mxu0 0
    %890 = vmatpush1.bf16.msra.mxu0 0
    %891 = vmatprep.subr.bf16.mxu0 0
    %892 = vmatpush1.bf16.msra.mxu0 0
    %893 = vmatprep.subr.bf16.mxu0 0
    %894 = vmatpush1.bf16.msra.mxu0 0
    %895 = vmatprep.mubr.bf16.mxu0 0
    %896 = vmatmul.mubr.bf16.gmra.mrb[0].mxu0 %v791
    %v897 = vpop.f32.mrb[0].mxu0
    %v898 = vadd.f32 %v813, %v897
    %v899 = vpop.f32.mrb[0].mxu0
    %v900 = vpop.f32.mrb[0].mxu0
    %v901 = vpop.f32.mrb[0].mxu0
    %902 = vdwg.mxu0
    %903 = vst [vmem:[#allocation2] sm:$0xff] %v898
    %v904 = vlaneseq
    %v905 = vand.u32 %v904, 127
    %vm906 = vcmp.lt.s32.totalorder %v905, 10
    %v907 = vsel %vm906, %v898, -inf
    %908 = vmax.xlane.f32.xlu0 %v907
    %v909 = vpop.xlane.xlu0 %908
    %v910 = vsub.f32 %v907, %v909
    %v911 = vmul.f32 %v910, 1.442695
    %v912 = vpow.pop %v911
    %913 = vadd.xlane.f32.xlu0 %v912
    %v914 = vpop.xlane.xlu0 %913
    %v915 = vlog2.pop %v914
    %v916 = vmul.f32 %v915, 0.6931472
    %v917 = vadd.f32 %v909, %v916
    %v918 = vld [vmem:[%s7] sm:$0xff]
    %v919 = vmul.f32 %v918, %v898
    %920 = vadd.xlane.f32.xlu0 %v919
    %v921 = vpop.xlane.xlu0 %920
    %v922 = vsub.f32 %v917, %v921
    %v923 = vlaneseq
    %v924 = vshrl.u32 %v923, 7
    %s925 = smul.u32 0, 8
    %v926 = vstv %s925
    %v927 = vadd.s32 %v924, %v926
    %vm928 = vcmp.lt.s32.totalorder %v927, 8
    %v929 = vsel %vm928, %v922, 0.0
    %vm930 = vcmask 7168
    %v931 = vsel %vm930, %v929, 0.0
    %932 = vadd.xlane.f32.xlu0 %v931
    %v933 = vpop.xlane.xlu0 %932
    %v934 = vrot.slane %v933, 4
    %v935 = vadd.f32 %v933, %v934
    %v936 = vrot.slane %v935, 2
    %v937 = vadd.f32 %v935, %v936
    %v938 = vrot.slane %v937, 1
    %v939 = vadd.f32 %v937, %v938
    %s940 = vtos %v939
    %v941 = vstv %s940
    %942 = vst [vmem:[%s9] sm:$0xff] %v941
    // Predicated region
    $region34: #{mlp_forward.1} parent=1 // pred_check
      _
    $region35: #{mlp_forward.1} parent=1 // pred_check_branch
      %944 = sbr.rel (0) target = $region37
    $region36: #{mlp_forward.1} parent=1 // pred_region
      %s946 = ssub.s32 128, 128
      %947 = vsyncadd [#allocation3], %s946
      %s949 = sshll.u32 [#allocation2], 4
      %s950 = int_to_ptr.vmem [resolvable:$true] %s949
      %952 = dma.vmem_to_hbm [thread:$0]  %s950, 128, %s8, [#allocation3]
    $region37: #{mlp_forward.1} parent=1 // pred_fallthru
      _
    // Predicated region
    $region38: #{mlp_forward.1} parent=1 // pred_check
      _
    $region39: #{mlp_forward.1} parent=1 // pred_check_branch
      %954 = sbr.rel (0) target = $region41
    $region40: #{mlp_forward.1} parent=1 // pred_region
      _
    $region41: #{mlp_forward.1} parent=1 // pred_fallthru
      _
    // Predicated region
    $region42: #{mlp_forward.1} parent=1 // pred_check
      _
    $region43: #{mlp_forward.1} parent=1 // pred_check_branch
      %956 = sbr.rel (0) target = $region45
    $region44: #{mlp_forward.1} parent=1 // pred_region
      %957 = dma.done [#allocation3], 128
    $region45: #{mlp_forward.1} parent=1 // pred_fallthru
      _
    // Predicated region
    $region46: #{mlp_forward.1} parent=1 // pred_check
      _
    $region47: #{mlp_forward.1} parent=1 // pred_check_branch
      %959 = sbr.rel (0) target = $region49
    $region48: #{mlp_forward.1} parent=1 // pred_region
      _
    $region49: #{mlp_forward.1} parent=1 // pred_fallthru
      _
    %960 = vsyncpa [#allocation3], 1

</llo_original>
